<compile_context>
chip_gen: v5e
topology: v5e:2x2
jax: 0.10.0
libtpu: 0.0.40
codegen_flags: <defaults>
</compile_context>

<pallas_src>
import math

import jax
import jax.numpy as jnp
import numpy as np
from jax.experimental import pallas as pl
from jax.experimental.pallas import tpu as pltpu


# ----------------------------------------------------------------------------
# Chip heuristics / tiling plan
# ----------------------------------------------------------------------------
def _device_kind():
    try:
        return jax.devices()[0].device_kind.lower()
    except Exception:
        return ""


def _default_pack(frame_len):
    """Frames packed per row so K' = pack*frame_len fills the MXU contraction
    dim (128 on v5e, 256 on v6e/v7x) and is lane-aligned when possible."""
    target = 128 if "v5" in _device_kind() else 256
    p = max(1, target // frame_len)
    while (p * frame_len) % 128 != 0 and p < 128:
        p += 1
    return p


def _num_tensorcores():
    """2 TensorCores per chip only on v7x; v5e/v6e have a single TC."""
    kind = _device_kind()
    return 2 if ("v7" in kind or "7x" in kind) else 1


def _round_up(x, mult):
    return ((x + mult - 1) // mult) * mult


def _plan_tiles(m_packed, nc_pref, max_tile_rows):
    """Pick (num_core_chunks, tile_rows, tiles_per_chunk, padded_packed_rows)."""
    max_tile = max(8, (max_tile_rows // 8) * 8)
    nc = nc_pref if (nc_pref > 1 and m_packed >= nc_pref * 8) else 1
    per_core = -(-m_packed // nc)
    tile = min(max_tile, _round_up(per_core, 8))
    n_tiles = -(-per_core // tile)
    m_packed_pad = nc * n_tiles * tile
    return nc, tile, n_tiles, m_packed_pad


# ----------------------------------------------------------------------------
# Fused Pallas kernel: packed matmul + hinge + per-core partial sums
# ----------------------------------------------------------------------------
def _fused_disc_loss_kernel(
    fr_gt_ref,   # (TILE, P*K)  packed real frames tile
    fr_gen_ref,  # (TILE, P*K)  packed generated frames tile
    w_ref,       # (P*K, P*N)   block-diagonal weight
    c_r_ref,     # (1, P*N)     1 - b (tiled)
    c_g_ref,     # (1, P*N)     1 + b (tiled)
    r_ref,       # out: (1, 1, P*N) per-core real hinge partial sums
    g_ref,       # out: (1, 1, P*N) per-core generated hinge partial sums
    r_acc,       # scratch: (1, P*N) f32
    g_acc,       # scratch: (1, P*N) f32
):
    i = pl.program_id(1)  # M-tile index within this core chunk (reduction axis)

    @pl.when(i == 0)
    def _():
        r_acc[...] = jnp.zeros_like(r_acc)
        g_acc[...] = jnp.zeros_like(g_acc)

    w = w_ref[...]
    # Scores stay in VMEM / vregs; (TILE, P*N) is never written to HBM.
    dot_r = jnp.dot(fr_gt_ref[...], w, preferred_element_type=jnp.float32)
    dot_g = jnp.dot(fr_gen_ref[...], w, preferred_element_type=jnp.float32)

    # Hinge with bias folded in: relu((1-b) - x@W) == relu(1 - (x@W + b)), etc.
    r_acc[...] += jnp.sum(jnp.maximum(c_r_ref[...] - dot_r, 0.0),
                          axis=0, keepdims=True)
    g_acc[...] += jnp.sum(jnp.maximum(c_g_ref[...] + dot_g, 0.0),
                          axis=0, keepdims=True)

    @pl.when(i == pl.num_programs(1) - 1)
    def _():
        r_ref[...] = r_acc[...].reshape(r_ref.shape)
        g_ref[...] = g_acc[...].reshape(g_ref.shape)


def fused_discriminator_loss(frames_gt, frames_gen, w, b, *,
                             pack=None, max_tile_rows=4096, num_cores=None):
    """Fused scores + hinge loss for real and generated frames.

    frames_gt / frames_gen: (M, K) f32
    w: (K, N_DISC) f32, b: (1, N_DISC) f32
    Returns (total scalar, r_losses (N_DISC,), g_losses (N_DISC,)).
    """
    m, k = frames_gt.shape
    assert frames_gen.shape == (m, k), (frames_gen.shape, (m, k))
    n_disc = w.shape[1]

    p = _default_pack(k) if pack is None else int(pack)
    kp, pn = p * k, p * n_disc

    nc_pref = _num_tensorcores() if num_cores is None else int(num_cores)
    m_packed = -(-m // p)
    nc, tile, n_tiles, m_packed_pad = _plan_tiles(m_packed, nc_pref, max_tile_rows)
    n_pad_frames = m_packed_pad * p - m

    def pack_frames(frames):
        # Copy-free when M already divides the packed layout; otherwise pad with
        # zero frames (corrected analytically below).
        if n_pad_frames:
            frames = jnp.pad(frames, ((0, n_pad_frames), (0, 0)))
        return frames.reshape(m_packed_pad, kp)

    fr_gt = pack_frames(frames_gt)
    fr_gen = pack_frames(frames_gen)

    # Block-diagonal weight: each of the P packed frames in a row hits its own
    # copy of W and lands in its own group of N_DISC output lanes.
    w_block = jnp.kron(jnp.eye(p, dtype=w.dtype), w)       # (P*K, P*N_DISC)
    b_tiled = jnp.tile(b.reshape(1, n_disc), (1, p)).astype(jnp.float32)
    c_r = 1.0 - b_tiled                                     # (1, P*N_DISC)
    c_g = 1.0 + b_tiled

    frame_spec = pl.BlockSpec((tile, kp), lambda c, i: (c * n_tiles + i, 0))
    out_spec = pl.BlockSpec((1, 1, pn), lambda c, i: (c, 0, 0))

    r_part, g_part = pl.pallas_call(
        _fused_disc_loss_kernel,
        out_shape=(
            jax.ShapeDtypeStruct((nc, 1, pn), jnp.float32),
            jax.ShapeDtypeStruct((nc, 1, pn), jnp.float32),
        ),
        grid=(nc, n_tiles),
        in_specs=[
            frame_spec,
            frame_spec,
            pl.BlockSpec((kp, pn), lambda c, i: (0, 0)),
            pl.BlockSpec((1, pn), lambda c, i: (0, 0)),
            pl.BlockSpec((1, pn), lambda c, i: (0, 0)),
        ],
        out_specs=(out_spec, out_spec),
        scratch_shapes=[
            pltpu.VMEM((1, pn), jnp.float32),
            pltpu.VMEM((1, pn), jnp.float32),
        ],
        compiler_params=pltpu.CompilerParams(
            # Leading axis: megacore split on v7x (sequential, harmless on 1-TC
            # chips); trailing axis carries the hinge accumulation -> arbitrary.
            dimension_semantics=("parallel", "arbitrary"),
            vmem_limit_bytes=32 * 1024 * 1024,
        ),
    )(fr_gt, fr_gen, w_block, c_r, c_g)

    # Reduce the per-core partials and the P column groups (tiny, fused by XLA).
    r_sum = jnp.sum(r_part, axis=(0, 1)).reshape(p, n_disc).sum(axis=0)
    g_sum = jnp.sum(g_part, axis=(0, 1)).reshape(p, n_disc).sum(axis=0)

    if n_pad_frames:
        # A zero pad frame scores exactly b -> contributes relu(1 -/+ b) to the
        # sums; subtract the exact amount instead of masking in-kernel.
        b_vec = b.reshape(n_disc).astype(jnp.float32)
        r_sum = r_sum - n_pad_frames * jnp.maximum(1.0 - b_vec, 0.0)
        g_sum = g_sum - n_pad_frames * jnp.maximum(1.0 + b_vec, 0.0)

    inv_m = 1.0 / m
    r_losses = r_sum * inv_m      # per-discriminator mean over all M frames
    g_losses = g_sum * inv_m
    total = jnp.sum(r_losses + g_losses)
    return total, r_losses, g_losses


# ----------------------------------------------------------------------------
# Audio framing (copy-free when T % frame_len == 0; runs inside jit)
# ----------------------------------------------------------------------------
def _frame_audio(audio, frame_len):
    bsz, t = audio.shape
    n = t // frame_len
    if n * frame_len != t:
        audio = audio[:, : n * frame_len]   # only materializes when trimming
    return audio.reshape(bsz * n, frame_len)


# ----------------------------------------------------------------------------
# Synthetic multi-sub-discriminator "model" (deterministic params)
# ----------------------------------------------------------------------------
class SyntheticMultiDiscriminator:
    def __init__(self, frame_len, n_disc, key):
        k_w, k_b = jax.random.split(key)
        self.frame_len = frame_len
        self.n_disc = n_disc
        self.w = (jax.random.normal(k_w, (frame_len, n_disc), jnp.float32)
                  / math.sqrt(frame_len))
        self.b = 0.01 * jax.random.normal(k_b, (1, n_disc), jnp.float32)

    def frame(self, audio):
        return _frame_audio(audio, self.frame_len)

    def __call__(self, y, y_hat):
        # Spec-compatible list interface (NOT the optimized hot path; the loss
        # helper closes over self.w/self.b and uses the fused kernel).
        real = (self.frame(y) @ self.w + self.b).T       # (N_DISC, S)
        gen = (self.frame(y_hat) @ self.w + self.b).T    # (N_DISC, S)
        real_score = [real[i] for i in range(self.n_disc)]
        gen_score = [gen[i] for i in range(self.n_disc)]
        # TODO(synk): real feature maps are not needed by the loss helper.
        return real_score, gen_score, [], []


# ----------------------------------------------------------------------------
# DiscriminatorLossHelper (JAX/Pallas)
# ----------------------------------------------------------------------------
class DiscriminatorLossHelper:
    def __init__(self, model, weight):
        self.model = model
        self.weight = float(weight)
        self.last_loss = 0.5
        self._pending_loss = None

        w, b = model.w, model.b
        frame_len, n_disc = model.frame_len, model.n_disc
        weight_f = self.weight

        def _loss_fn(audio_gt, audio):
            frames_gt = _frame_audio(audio_gt, frame_len)
            frames_gen = _frame_audio(audio, frame_len)
            total, _, _ = fused_discriminator_loss(frames_gt, frames_gen, w, b)
            loss = (total / n_disc).reshape(1)  # matches torch: loss /= len(r_losses)
            return loss, loss * weight_f

        self._loss_fn = jax.jit(_loss_fn)

    def get_disc_lr_multiplier(self):
        ideal_loss = 2.0
        f_max = 4.0
        h_min = 0.1
        x_max = 0.05
        x_min = 0.05
        x = abs(self.last_loss - ideal_loss)
        if self.last_loss > ideal_loss:
            return min(math.pow(f_max, x / x_max), f_max)
        return max(math.pow(h_min, x / x_min), h_min)

    def discriminator_loss(self, disc_real_outputs, disc_generated_outputs):
        # Spec-compatible list API (off the hot path; forward uses the fused kernel).
        r_losses = [jnp.mean(jnp.maximum(1.0 - dr, 0.0)) for dr in disc_real_outputs]
        g_losses = [jnp.mean(jnp.maximum(1.0 + dg, 0.0)) for dg in disc_generated_outputs]
        loss = sum(r + g for r, g in zip(r_losses, g_losses)).reshape(1)
        return loss, r_losses, g_losses

    def _consume_pending_ema(self):
        if self._pending_loss is not None:
            self.last_loss = (self.last_loss * 0.95
                              + float(self._pending_loss[0]) * 0.05)
            self._pending_loss = None

    def forward(self, audio_gt, audio):
        # One-step-delayed EMA readback: consume the PREVIOUS step's loss (already
        # computed on device) so this step's dispatch is never serialized on a
        # device->host sync.
        # TODO(synk): torch updates last_loss with the CURRENT loss via .item();
        # here the EMA lags one step (call sync_last_loss() for an exact value).
        self._consume_pending_ema()
        loss, weighted = self._loss_fn(audio_gt, audio)
        self._pending_loss = loss
        return weighted

    def sync_last_loss(self):
        self._consume_pending_ema()
        return self.last_loss

    __call__ = forward


# ----------------------------------------------------------------------------
# main
# ----------------------------------------------------------------------------
if __name__ == "__main__":
    B, T = 2, 2048
    FRAME_LEN, N_DISC = 64, 4

    key = jax.random.PRNGKey(0)
    k_model, k_gt, k_gen = jax.random.split(key, 3)

    model = SyntheticMultiDiscriminator(FRAME_LEN, N_DISC, k_model)
    helper = DiscriminatorLossHelper(model, weight=1.0)

    audio_gt = jax.random.normal(k_gt, (B, T), jnp.float32)
    audio = jax.random.normal(k_gen, (B, T), jnp.float32)

    out = helper(audio_gt, audio)
    out = jax.block_until_ready(out)

    # ---- pure-JAX reference ------------------------------------------------
    def ref_losses(fr_gt, fr_gen, w, b):
        s_r = fr_gt @ w + b
        s_g = fr_gen @ w + b
        r = jnp.mean(jnp.maximum(1.0 - s_r, 0.0), axis=0)   # (N_DISC,)
        g = jnp.mean(jnp.maximum(1.0 + s_g, 0.0), axis=0)
        return jnp.sum(r + g), r, g

    frames_gt = _frame_audio(audio_gt, FRAME_LEN)
    frames_gen = _frame_audio(audio, FRAME_LEN)
    ref_total, ref_r, ref_g = ref_losses(frames_gt, frames_gen, model.w, model.b)
    ref_weighted = (ref_total / N_DISC * 1.0).reshape(1)
    np.testing.assert_allclose(np.asarray(out), np.asarray(ref_weighted),
                               rtol=1e-5, atol=1e-5)

    # ---- multi-tile + 2-chunk (parallel leading axis) accumulation path ----
    tot2, r2, g2 = fused_discriminator_loss(
        frames_gt, frames_gen, model.w, model.b,
        pack=4, max_tile_rows=8, num_cores=2)
    jax.block_until_ready(tot2)
    np.testing.assert_allclose(np.asarray(tot2), np.asarray(ref_total), rtol=1e-5, atol=1e-5)
    np.testing.assert_allclose(np.asarray(r2), np.asarray(ref_r), rtol=1e-5, atol=1e-5)
    np.testing.assert_allclose(np.asarray(g2), np.asarray(ref_g), rtol=1e-5, atol=1e-5)

    # ---- ragged M: zero-pad frames + exact analytic correction -------------
    m_ragged = 56
    ref_total3, ref_r3, ref_g3 = ref_losses(frames_gt[:m_ragged], frames_gen[:m_ragged],
                                            model.w, model.b)
    tot3, r3, g3 = fused_discriminator_loss(
        frames_gt[:m_ragged], frames_gen[:m_ragged], model.w, model.b,
        pack=4, max_tile_rows=8, num_cores=1)
    jax.block_until_ready(tot3)
    np.testing.assert_allclose(np.asarray(tot3), np.asarray(ref_total3), rtol=1e-5, atol=1e-5)
    np.testing.assert_allclose(np.asarray(r3), np.asarray(ref_r3), rtol=1e-5, atol=1e-5)
    np.testing.assert_allclose(np.asarray(g3), np.asarray(ref_g3), rtol=1e-5, atol=1e-5)

    print("KERNEL_OK")
</pallas_src>

<mosaic_0001>
module attributes {stable_mosaic.version = 11 : i64} {
  func.func @_fused_disc_loss_kernel(%arg0: i32, %arg1: i32, %arg2: memref<16x256xf32, #tpu.memory_space<vmem>>, %arg3: memref<16x256xf32, #tpu.memory_space<vmem>>, %arg4: memref<256x16xf32, #tpu.memory_space<vmem>>, %arg5: memref<1x16xf32, #tpu.memory_space<vmem>>, %arg6: memref<1x16xf32, #tpu.memory_space<vmem>>, %arg7: memref<1x1x16xf32, #tpu.memory_space<vmem>>, %arg8: memref<1x1x16xf32, #tpu.memory_space<vmem>>, %arg9: memref<1x16xf32, #tpu.memory_space<vmem>>, %arg10: memref<1x16xf32, #tpu.memory_space<vmem>>) attributes {dimension_semantics = [#tpu.dimension_semantics<parallel>, #tpu.dimension_semantics<arbitrary>], iteration_bounds = array<i64: 1, 1>, scalar_prefetch = 0 : i64, scratch_operands = 2 : i64, tpu.core_type = #tpu.core_type<tc>, window_params = [{transform_indices = @transform_0, window_bounds = array<i64: 16, 256>}, {transform_indices = @transform_1, window_bounds = array<i64: 16, 256>}, {pipeline_mode = #tpu.pipeline_mode<synchronous>, transform_indices = @transform_2, window_bounds = array<i64: 256, 16>}, {pipeline_mode = #tpu.pipeline_mode<synchronous>, transform_indices = @transform_3, window_bounds = array<i64: 1, 16>}, {pipeline_mode = #tpu.pipeline_mode<synchronous>, transform_indices = @transform_4, window_bounds = array<i64: 1, 16>}, {transform_indices = @transform_5, window_bounds = array<i64: 1, 1, 16>}, {transform_indices = @transform_6, window_bounds = array<i64: 1, 1, 16>}]} {
    %c0_i32 = arith.constant 0 : i32
    %0 = arith.cmpi eq, %arg1, %c0_i32 : i32
    %1 = arith.extui %0 : i1 to i32
    %c0_i32_0 = arith.constant 0 : i32
    %2 = arith.cmpi ne, %1, %c0_i32_0 : i32
    scf.if %2 {
      %cst_25 = arith.constant 0.000000e+00 : f32
      %31 = vector.broadcast %cst_25 : f32 to vector<1x16xf32>
      %c0_26 = arith.constant 0 : index
      %c0_27 = arith.constant 0 : index
      %32 = vector.load %arg9[%c0_26, %c0_27] : memref<1x16xf32, #tpu.memory_space<vmem>>, vector<1x16xf32>
      tpu.vector_store %arg9[%c0_26, %c0_27], %31 {strides = array<i32>} : memref<1x16xf32, #tpu.memory_space<vmem>>, vector<1x16xf32>,
      %cst_28 = arith.constant 0.000000e+00 : f32
      %33 = vector.broadcast %cst_28 : f32 to vector<1x16xf32>
      %c0_29 = arith.constant 0 : index
      %c0_30 = arith.constant 0 : index
      %34 = vector.load %arg10[%c0_29, %c0_30] : memref<1x16xf32, #tpu.memory_space<vmem>>, vector<1x16xf32>
      tpu.vector_store %arg10[%c0_29, %c0_30], %33 {strides = array<i32>} : memref<1x16xf32, #tpu.memory_space<vmem>>, vector<1x16xf32>,
    } else {
    }
    %c0 = arith.constant 0 : index
    %c0_1 = arith.constant 0 : index
    %3 = vector.load %arg4[%c0, %c0_1] : memref<256x16xf32, #tpu.memory_space<vmem>>, vector<256x16xf32>
    %c0_2 = arith.constant 0 : index
    %c0_3 = arith.constant 0 : index
    %4 = vector.load %arg2[%c0_2, %c0_3] : memref<16x256xf32, #tpu.memory_space<vmem>>, vector<16x256xf32>
    %cst = arith.constant dense<0.000000e+00> : vector<16x16xf32>
    %5 = tpu.matmul %4, %3, %cst {dimension_numbers = #tpu.dot_dimension_numbers<[1], [0], [0], [1], [0, 0, 1, 1], [], []>} : vector<16x256xf32>, vector<256x16xf32>, vector<16x16xf32> -> vector<16x16xf32>
    %c0_4 = arith.constant 0 : index
    %c0_5 = arith.constant 0 : index
    %6 = vector.load %arg3[%c0_4, %c0_5] : memref<16x256xf32, #tpu.memory_space<vmem>>, vector<16x256xf32>
    %cst_6 = arith.constant dense<0.000000e+00> : vector<16x16xf32>
    %7 = tpu.matmul %6, %3, %cst_6 {dimension_numbers = #tpu.dot_dimension_numbers<[1], [0], [0], [1], [0, 0, 1, 1], [], []>} : vector<16x256xf32>, vector<256x16xf32>, vector<16x16xf32> -> vector<16x16xf32>
    %c0_7 = arith.constant 0 : index
    %c0_8 = arith.constant 0 : index
    %8 = vector.load %arg9[%c0_7, %c0_8] : memref<1x16xf32, #tpu.memory_space<vmem>>, vector<1x16xf32>
    %c0_9 = arith.constant 0 : index
    %c0_10 = arith.constant 0 : index
    %9 = vector.load %arg5[%c0_9, %c0_10] : memref<1x16xf32, #tpu.memory_space<vmem>>, vector<1x16xf32>
    %10 = vector.broadcast %9 : vector<1x16xf32> to vector<16x16xf32>
    %11 = arith.subf %10, %5 : vector<16x16xf32>
    %cst_11 = arith.constant 0.000000e+00 : f32
    %12 = vector.broadcast %cst_11 : f32 to vector<16x16xf32>
    %13 = arith.maximumf %11, %12 : vector<16x16xf32>
    %cst_12 = arith.constant dense<0.000000e+00> : vector<16xf32>
    %14 = vector.multi_reduction <add>, %13, %cst_12 [0] : vector<16x16xf32> to vector<16xf32>
    %15 = vector.shape_cast %14 : vector<16xf32> to vector<1x16xf32>
    %16 = arith.addf %8, %15 : vector<1x16xf32>
    %c0_13 = arith.constant 0 : index
    %c0_14 = arith.constant 0 : index
    %17 = vector.load %arg9[%c0_13, %c0_14] : memref<1x16xf32, #tpu.memory_space<vmem>>, vector<1x16xf32>
    tpu.vector_store %arg9[%c0_13, %c0_14], %16 {strides = array<i32>} : memref<1x16xf32, #tpu.memory_space<vmem>>, vector<1x16xf32>,
    %c0_15 = arith.constant 0 : index
    %c0_16 = arith.constant 0 : index
    %18 = vector.load %arg10[%c0_15, %c0_16] : memref<1x16xf32, #tpu.memory_space<vmem>>, vector<1x16xf32>
    %c0_17 = arith.constant 0 : index
    %c0_18 = arith.constant 0 : index
    %19 = vector.load %arg6[%c0_17, %c0_18] : memref<1x16xf32, #tpu.memory_space<vmem>>, vector<1x16xf32>
    %20 = vector.broadcast %19 : vector<1x16xf32> to vector<16x16xf32>
    %21 = arith.addf %20, %7 : vector<16x16xf32>
    %cst_19 = arith.constant 0.000000e+00 : f32
    %22 = vector.broadcast %cst_19 : f32 to vector<16x16xf32>
    %23 = arith.maximumf %21, %22 : vector<16x16xf32>
    %cst_20 = arith.constant dense<0.000000e+00> : vector<16xf32>
    %24 = vector.multi_reduction <add>, %23, %cst_20 [0] : vector<16x16xf32> to vector<16xf32>
    %25 = vector.shape_cast %24 : vector<16xf32> to vector<1x16xf32>
    %26 = arith.addf %18, %25 : vector<1x16xf32>
    %c0_21 = arith.constant 0 : index
    %c0_22 = arith.constant 0 : index
    %27 = vector.load %arg10[%c0_21, %c0_22] : memref<1x16xf32, #tpu.memory_space<vmem>>, vector<1x16xf32>
    tpu.vector_store %arg10[%c0_21, %c0_22], %26 {strides = array<i32>} : memref<1x16xf32, #tpu.memory_space<vmem>>, vector<1x16xf32>,
    %c0_i32_23 = arith.constant 0 : i32
    %28 = arith.cmpi eq, %arg1, %c0_i32_23 : i32
    %29 = arith.extui %28 : i1 to i32
    %c0_i32_24 = arith.constant 0 : i32
    %30 = arith.cmpi ne, %29, %c0_i32_24 : i32
    scf.if %30 {
      %c0_25 = arith.constant 0 : index
      %c0_26 = arith.constant 0 : index
      %31 = vector.load %arg9[%c0_25, %c0_26] : memref<1x16xf32, #tpu.memory_space<vmem>>, vector<1x16xf32>
      %32 = vector.shape_cast %31 : vector<1x16xf32> to vector<1x1x16xf32>
      %c0_27 = arith.constant 0 : index
      %c0_28 = arith.constant 0 : index
      %c0_29 = arith.constant 0 : index
      %33 = vector.load %arg7[%c0_27, %c0_28, %c0_29] : memref<1x1x16xf32, #tpu.memory_space<vmem>>, vector<1x1x16xf32>
      tpu.vector_store %arg7[%c0_27, %c0_28, %c0_29], %32 {strides = array<i32>} : memref<1x1x16xf32, #tpu.memory_space<vmem>>, vector<1x1x16xf32>,
      %c0_30 = arith.constant 0 : index
      %c0_31 = arith.constant 0 : index
      %34 = vector.load %arg10[%c0_30, %c0_31] : memref<1x16xf32, #tpu.memory_space<vmem>>, vector<1x16xf32>
      %35 = vector.shape_cast %34 : vector<1x16xf32> to vector<1x1x16xf32>
      %c0_32 = arith.constant 0 : index
      %c0_33 = arith.constant 0 : index
      %c0_34 = arith.constant 0 : index
      %36 = vector.load %arg8[%c0_32, %c0_33, %c0_34] : memref<1x1x16xf32, #tpu.memory_space<vmem>>, vector<1x1x16xf32>
      tpu.vector_store %arg8[%c0_32, %c0_33, %c0_34], %35 {strides = array<i32>} : memref<1x1x16xf32, #tpu.memory_space<vmem>>, vector<1x1x16xf32>,
    } else {
    }
    return
  }
  func.func @transform_0(%arg0: i32, %arg1: i32) -> (i32, i32) {
    %c1_i32 = arith.constant 1 : i32
    %0 = arith.muli %arg0, %c1_i32 : i32
    %1 = arith.addi %0, %arg1 : i32
    %c0_i32 = arith.constant 0 : i32
    %c0_i32_0 = arith.constant 0 : i32
    return %1, %c0_i32 : i32, i32
  }
  func.func @transform_1(%arg0: i32, %arg1: i32) -> (i32, i32) {
    %c1_i32 = arith.constant 1 : i32
    %0 = arith.muli %arg0, %c1_i32 : i32
    %1 = arith.addi %0, %arg1 : i32
    %c0_i32 = arith.constant 0 : i32
    %c0_i32_0 = arith.constant 0 : i32
    return %1, %c0_i32 : i32, i32
  }
  func.func @transform_2(%arg0: i32, %arg1: i32) -> (i32, i32) {
    %c0_i32 = arith.constant 0 : i32
    %c0_i32_0 = arith.constant 0 : i32
    %c0_i32_1 = arith.constant 0 : i32
    return %c0_i32, %c0_i32_0 : i32, i32
  }
  func.func @transform_3(%arg0: i32, %arg1: i32) -> (i32, i32) {
    %c0_i32 = arith.constant 0 : i32
    %c0_i32_0 = arith.constant 0 : i32
    %c0_i32_1 = arith.constant 0 : i32
    return %c0_i32, %c0_i32_0 : i32, i32
  }
  func.func @transform_4(%arg0: i32, %arg1: i32) -> (i32, i32) {
    %c0_i32 = arith.constant 0 : i32
    %c0_i32_0 = arith.constant 0 : i32
    %c0_i32_1 = arith.constant 0 : i32
    return %c0_i32, %c0_i32_0 : i32, i32
  }
  func.func @transform_5(%arg0: i32, %arg1: i32) -> (i32, i32, i32) {
    %c0_i32 = arith.constant 0 : i32
    %c0_i32_0 = arith.constant 0 : i32
    %c0_i32_1 = arith.constant 0 : i32
    return %arg0, %c0_i32, %c0_i32_0 : i32, i32, i32
  }
  func.func @transform_6(%arg0: i32, %arg1: i32) -> (i32, i32, i32) {
    %c0_i32 = arith.constant 0 : i32
    %c0_i32_0 = arith.constant 0 : i32
    %c0_i32_1 = arith.constant 0 : i32
    return %arg0, %c0_i32, %c0_i32_0 : i32, i32, i32
  }
}

</mosaic_0001>

<llo_original>
// kernel: _loss_fn.1
$region0: #{_loss_fn.1}
  #allocation0 [shape = 'u32[]', space=smem, size = 0x4, offset = 0x4, fixed_abs, tag = 'smem constant byte address 0x4 - core index']
  #allocation1 [shape = 'u32[72,128]{1,0:T(1,128)}', space=vmem, size = 0x9000, scoped, tag = 'internal scratch']
  #allocation2 [shape = 'f32[1,16]{1,0:T(1,128)}', space=vmem, size = 0x200, scoped, tag = 'scratch operand']
  #allocation3 [shape = 'f32[1,16]{1,0:T(1,128)}', space=vmem, size = 0x200, scoped, tag = 'scratch operand']
  %s0 = inlined_call_operand.vmem [shape: f32[16,256], index: 0, kind: input, shape index: {}]
  %s1 = inlined_call_operand.vmem [shape: f32[16,256], index: 1, kind: input, shape index: {}]
  %s2 = inlined_call_operand.vmem [shape: f32[256,16], index: 2, kind: input, shape index: {}]
  %s3 = inlined_call_operand.vmem [shape: f32[1,16], index: 3, kind: input, shape index: {}]
  %s4 = inlined_call_operand.vmem [shape: f32[1,16], index: 4, kind: input, shape index: {}]
  %s5 = inlined_call_operand.vmem [shape: f32[1,1,16], index: 5, kind: output, shape index: {0}]
  %s6 = inlined_call_operand.vmem [shape: f32[1,1,16], index: 6, kind: output, shape index: {1}]
  %7 = xla_tuple %s5, %s6
  %s8 = sld [smem:[#allocation0]]
  $region46: #{_loss_fn.1} parent=0
    _
  %s10 = ssub.s32 1, %s8
  %s11 = scalar_select 0, %s10, %s8
  // Predicated region
  $region2: #{_loss_fn.1} parent=0 // pred_check
    _
  $region3: #{_loss_fn.1} parent=0 // pred_check_branch
    %13 = sbr.rel (0) target = $region5
  $region4: #{_loss_fn.1} parent=0 // pred_region
    %s14 = sadd.s32 0, 0
    %s15 = smul.u32 2, %s14
    %p16 = scmp.lt.s32.totalorder %s15, 1
    %s17 = scalar_select %p16, %s15, 1
    %s18 = smul.addr %s17, 2
    %s19 = smul.addr %s18, 8
    %s20 = scalar_lea.vmem %s0, %s19
    %s21 = sadd.s32 0, 0
    %s22 = smul.u32 2, %s21
  $region5: #{_loss_fn.1} parent=0 // pred_fallthru
    _
  // Predicated region
  $region6: #{_loss_fn.1} parent=0 // pred_check
    _
  $region7: #{_loss_fn.1} parent=0 // pred_check_branch
    %24 = sbr.rel (0) target = $region9
  $region8: #{_loss_fn.1} parent=0 // pred_region
    %s25 = sadd.s32 0, 0
    %s26 = smul.u32 2, %s25
    %p27 = scmp.lt.s32.totalorder %s26, 1
    %s28 = scalar_select %p27, %s26, 1
    %s29 = smul.addr %s28, 2
    %s30 = smul.addr %s29, 8
    %s31 = scalar_lea.vmem %s1, %s30
    %s32 = sadd.s32 0, 0
    %s33 = smul.u32 2, %s32
  $region9: #{_loss_fn.1} parent=0 // pred_fallthru
    _
  // Predicated region
  $region10: #{_loss_fn.1} parent=0 // pred_check
    _
  $region11: #{_loss_fn.1} parent=0 // pred_check_branch
    %35 = sbr.rel (0) target = $region13
  $region12: #{_loss_fn.1} parent=0 // pred_region
    _
  $region13: #{_loss_fn.1} parent=0 // pred_fallthru
    _
  // Predicated region
  $region14: #{_loss_fn.1} parent=0 // pred_check
    _
  $region15: #{_loss_fn.1} parent=0 // pred_check_branch
    %37 = sbr.rel (0) target = $region17
  $region16: #{_loss_fn.1} parent=0 // pred_region
    _
  $region17: #{_loss_fn.1} parent=0 // pred_fallthru
    _
  // Predicated region
  $region18: #{_loss_fn.1} parent=0 // pred_check
    _
  $region19: #{_loss_fn.1} parent=0 // pred_check_branch
    %39 = sbr.rel (0) target = $region21
  $region20: #{_loss_fn.1} parent=0 // pred_region
    _
  $region21: #{_loss_fn.1} parent=0 // pred_fallthru
    _
  %s40 = sadd.s32 0, 0
  %s41 = smul.u32 2, %s40
  %p42 = scmp.lt.s32.totalorder %s41, 1
  %s43 = scalar_select %p42, %s41, 1
  %s44 = smul.addr %s43, 2
  %s45 = smul.addr %s44, 8
  %s46 = scalar_lea.vmem %s0, %s45
  %s47 = sadd.s32 0, 0
  %s48 = smul.u32 2, %s47
  %p49 = scmp.lt.s32.totalorder %s48, 1
  %s50 = scalar_select %p49, %s48, 1
  %s51 = smul.addr %s50, 2
  %s52 = smul.addr %s51, 8
  %s53 = scalar_lea.vmem %s1, %s52
  %s54 = sadd.s32 0, 0
  %s55 = smul.u32 2, %s54
  %p56 = scmp.lt.s32.totalorder %s55, 1
  %s57 = scalar_select %p56, %s55, 1
  %s58 = smul.addr %s57, 2
  %s59 = smul.addr %s58, 8
  %s60 = scalar_lea.vmem %s0, %s59
  %s61 = sadd.s32 0, 0
  %s62 = smul.u32 2, %s61
  %s63 = sadd.s32 0, 0
  %s64 = smul.u32 2, %s63
  %p65 = scmp.lt.s32.totalorder %s64, 1
  %s66 = scalar_select %p65, %s64, 1
  %s67 = smul.addr %s66, 2
  %s68 = smul.addr %s67, 8
  %s69 = scalar_lea.vmem %s1, %s68
  %s70 = sadd.s32 0, 0
  %s71 = smul.u32 2, %s70
  %p72 = scmp.eq.s32.totalorder 0, 0
  // Predicated region
  $region22: #{_loss_fn.1} parent=0 // pred_check
    %p73 = pneg %p72
  $region23: #{_loss_fn.1} parent=0 // pred_check_branch
    %75 = sbr.rel (%p73) target = $region25
  $region24: #{_loss_fn.1} parent=0 // pred_region
    %vm76 = vcmask 122880
    %77 = vst.msk [vmem:[#allocation2] sm:$0x1] %vm76, 0.0
    %78 = vst.msk [vmem:[#allocation3] sm:$0x1] %vm76, 0.0
  $region25: #{_loss_fn.1} parent=0 // pred_fallthru
    _
  %v79 = vld [vmem:[%s2] sm:$0xff]
  %v80 = vld [vmem:[%s2 + $0x8] sm:$0xff]
  %v81 = vld [vmem:[%s2 + $0x10] sm:$0xff]
  %v82 = vld [vmem:[%s2 + $0x18] sm:$0xff]
  %v83 = vld [vmem:[%s2 + $0x20] sm:$0xff]
  %v84 = vld [vmem:[%s2 + $0x28] sm:$0xff]
  %v85 = vld [vmem:[%s2 + $0x30] sm:$0xff]
  %v86 = vld [vmem:[%s2 + $0x38] sm:$0xff]
  %v87 = vld [vmem:[%s2 + $0x40] sm:$0xff]
  %v88 = vld [vmem:[%s2 + $0x48] sm:$0xff]
  %v89 = vld [vmem:[%s2 + $0x50] sm:$0xff]
  %v90 = vld [vmem:[%s2 + $0x58] sm:$0xff]
  %v91 = vld [vmem:[%s2 + $0x60] sm:$0xff]
  %v92 = vld [vmem:[%s2 + $0x68] sm:$0xff]
  %v93 = vld [vmem:[%s2 + $0x70] sm:$0xff]
  %v94 = vld [vmem:[%s2 + $0x78] sm:$0xff]
  %v95 = vld [vmem:[%s2 + $0x80] sm:$0xff]
  %v96 = vld [vmem:[%s2 + $0x88] sm:$0xff]
  %v97 = vld [vmem:[%s2 + $0x90] sm:$0xff]
  %v98 = vld [vmem:[%s2 + $0x98] sm:$0xff]
  %v99 = vld [vmem:[%s2 + $0xa0] sm:$0xff]
  %v100 = vld [vmem:[%s2 + $0xa8] sm:$0xff]
  %v101 = vld [vmem:[%s2 + $0xb0] sm:$0xff]
  %v102 = vld [vmem:[%s2 + $0xb8] sm:$0xff]
  %v103 = vld [vmem:[%s2 + $0xc0] sm:$0xff]
  %v104 = vld [vmem:[%s2 + $0xc8] sm:$0xff]
  %v105 = vld [vmem:[%s2 + $0xd0] sm:$0xff]
  %v106 = vld [vmem:[%s2 + $0xd8] sm:$0xff]
  %v107 = vld [vmem:[%s2 + $0xe0] sm:$0xff]
  %v108 = vld [vmem:[%s2 + $0xe8] sm:$0xff]
  %v109 = vld [vmem:[%s2 + $0xf0] sm:$0xff]
  %v110 = vld [vmem:[%s2 + $0xf8] sm:$0xff]
  %v111 = vld [vmem:[%s60] sm:$0xff]
  %v112 = vld [vmem:[%s60 + $0x8] sm:$0xff]
  %v113 = vld [vmem:[%s60 + $0x10] sm:$0xff]
  %v114 = vld [vmem:[%s60 + $0x18] sm:$0xff]
  %115 = vmatpush.msra.mxu0 %v94
  %116 = vmatpush.msra.mxu0 %v93
  %117 = vmatpush.msra.mxu0 %v92
  %118 = vmatpush.msra.mxu0 %v91
  %119 = vmatpush.msra.mxu0 %v90
  %120 = vmatpush.msra.mxu0 %v89
  %121 = vmatpush.msra.mxu0 %v88
  %122 = vmatpush.msra.mxu0 %v87
  %123 = vmatpush.msra.mxu0 %v86
  %124 = vmatpush.msra.mxu0 %v85
  %125 = vmatpush.msra.mxu0 %v84
  %126 = vmatpush.msra.mxu0 %v83
  %127 = vmatpush.msra.mxu0 %v82
  %128 = vmatpush.msra.mxu0 %v81
  %129 = vmatpush.msra.mxu0 %v80
  %130 = vmatpush.msra.mxu0 %v79
  %131 = vmatmul.f32.gmra.mxu0 %v111
  %v132 = vpop.f32.mrf.mxu0
  %v133 = vadd.f32 0.0, %v132
  %134 = vmatmul.f32.gmra.mxu0 %v113
  %v135 = vpop.f32.mrf.mxu0
  %v136 = vadd.f32 0.0, %v135
  %137 = vdwg.mxu0
  %138 = vmatpush.msra.mxu0 %v110
  %139 = vmatpush.msra.mxu0 %v109
  %140 = vmatpush.msra.mxu0 %v108
  %141 = vmatpush.msra.mxu0 %v107
  %142 = vmatpush.msra.mxu0 %v106
  %143 = vmatpush.msra.mxu0 %v105
  %144 = vmatpush.msra.mxu0 %v104
  %145 = vmatpush.msra.mxu0 %v103
  %146 = vmatpush.msra.mxu0 %v102
  %147 = vmatpush.msra.mxu0 %v101
  %148 = vmatpush.msra.mxu0 %v100
  %149 = vmatpush.msra.mxu0 %v99
  %150 = vmatpush.msra.mxu0 %v98
  %151 = vmatpush.msra.mxu0 %v97
  %152 = vmatpush.msra.mxu0 %v96
  %153 = vmatpush.msra.mxu0 %v95
  %154 = vmatmul.f32.gmra.mxu0 %v112
  %v155 = vpop.f32.mrf.mxu0
  %v156 = vadd.f32 %v133, %v155
  %157 = vmatmul.f32.gmra.mxu0 %v114
  %v158 = vpop.f32.mrf.mxu0
  %v159 = vadd.f32 %v136, %v158
  %160 = vdwg.mxu0
  %v161 = vld [vmem:[%s69] sm:$0xff]
  %v162 = vld [vmem:[%s69 + $0x8] sm:$0xff]
  %v163 = vld [vmem:[%s69 + $0x10] sm:$0xff]
  %v164 = vld [vmem:[%s69 + $0x18] sm:$0xff]
  %165 = vmatpush.msra.mxu0 %v94
  %166 = vmatpush.msra.mxu0 %v93
  %167 = vmatpush.msra.mxu0 %v92
  %168 = vmatpush.msra.mxu0 %v91
  %169 = vmatpush.msra.mxu0 %v90
  %170 = vmatpush.msra.mxu0 %v89
  %171 = vmatpush.msra.mxu0 %v88
  %172 = vmatpush.msra.mxu0 %v87
  %173 = vmatpush.msra.mxu0 %v86
  %174 = vmatpush.msra.mxu0 %v85
  %175 = vmatpush.msra.mxu0 %v84
  %176 = vmatpush.msra.mxu0 %v83
  %177 = vmatpush.msra.mxu0 %v82
  %178 = vmatpush.msra.mxu0 %v81
  %179 = vmatpush.msra.mxu0 %v80
  %180 = vmatpush.msra.mxu0 %v79
  %181 = vmatmul.f32.gmra.mxu0 %v161
  %v182 = vpop.f32.mrf.mxu0
  %v183 = vadd.f32 0.0, %v182
  %184 = vmatmul.f32.gmra.mxu0 %v163
  %v185 = vpop.f32.mrf.mxu0
  %v186 = vadd.f32 0.0, %v185
  %187 = vdwg.mxu0
  %188 = vmatpush.msra.mxu0 %v110
  %189 = vmatpush.msra.mxu0 %v109
  %190 = vmatpush.msra.mxu0 %v108
  %191 = vmatpush.msra.mxu0 %v107
  %192 = vmatpush.msra.mxu0 %v106
  %193 = vmatpush.msra.mxu0 %v105
  %194 = vmatpush.msra.mxu0 %v104
  %195 = vmatpush.msra.mxu0 %v103
  %196 = vmatpush.msra.mxu0 %v102
  %197 = vmatpush.msra.mxu0 %v101
  %198 = vmatpush.msra.mxu0 %v100
  %199 = vmatpush.msra.mxu0 %v99
  %200 = vmatpush.msra.mxu0 %v98
  %201 = vmatpush.msra.mxu0 %v97
  %202 = vmatpush.msra.mxu0 %v96
  %203 = vmatpush.msra.mxu0 %v95
  %204 = vmatmul.f32.gmra.mxu0 %v162
  %v205 = vpop.f32.mrf.mxu0
  %v206 = vadd.f32 %v183, %v205
  %207 = vmatmul.f32.gmra.mxu0 %v164
  %v208 = vpop.f32.mrf.mxu0
  %v209 = vadd.f32 %v186, %v208
  %210 = vdwg.mxu0
  %v211 = vld [vmem:[#allocation2] sm:$0x1]
  %v212 = vld [vmem:[%s3] sm:$0x1]
  %v214 = vperm.slane %v212, 0
  %v216 = vsub.f32 %v214, %v156
  %v217 = vsub.f32 %v214, %v159
  %v218 = vmax.f32 %v216, 0.0
  %v219 = vmax.f32 %v217, 0.0
  %vm220 = vcmask 130048
  %v221 = vsel %vm220, %v218, 0.0
  %v222 = vsel %vm220, %v219, 0.0
  %v223 = vadd.f32 %v221, %v222
  %v224 = vrot.slane %v223, 4
  %v225 = vadd.f32 %v223, %v224
  %v226 = vrot.slane %v225, 2
  %v227 = vadd.f32 %v225, %v226
  %v228 = vrot.slane %v227, 1
  %v229 = vadd.f32 %v227, %v228
  %v230 = vadd.f32 %v211, %v229
  %vm231 = vcmask 122880
  %232 = vst.msk [vmem:[#allocation2] sm:$0x1] %vm231, %v230
  %v233 = vld [vmem:[#allocation3] sm:$0x1]
  %v234 = vld [vmem:[%s4] sm:$0x1]
  %v236 = vperm.slane %v234, 0
  %v238 = vadd.f32 %v236, %v206
  %v239 = vadd.f32 %v236, %v209
  %v240 = vmax.f32 %v238, 0.0
  %v241 = vmax.f32 %v239, 0.0
  %v242 = vsel %vm220, %v240, 0.0
  %v243 = vsel %vm220, %v241, 0.0
  %v244 = vadd.f32 %v242, %v243
  %v245 = vrot.slane %v244, 4
  %v246 = vadd.f32 %v244, %v245
  %v247 = vrot.slane %v246, 2
  %v248 = vadd.f32 %v246, %v247
  %v249 = vrot.slane %v248, 1
  %v250 = vadd.f32 %v248, %v249
  %v251 = vadd.f32 %v233, %v250
  %252 = vst.msk [vmem:[#allocation3] sm:$0x1] %vm231, %v251
  // Predicated region
  $region26: #{_loss_fn.1} parent=0 // pred_check
    %p253 = pneg %p72
  $region27: #{_loss_fn.1} parent=0 // pred_check_branch
    %255 = sbr.rel (%p253) target = $region29
  $region28: #{_loss_fn.1} parent=0 // pred_region
    %v256 = vld [vmem:[#allocation2] sm:$0x1]
    %257 = vst.msk [vmem:[%s5] sm:$0x1] %vm231, %v256
    %v258 = vld [vmem:[#allocation3] sm:$0x1]
    %259 = vst.msk [vmem:[%s6] sm:$0x1] %vm231, %v258
  $region29: #{_loss_fn.1} parent=0 // pred_fallthru
    _
  // Predicated region
  $region30: #{_loss_fn.1} parent=0 // pred_check
    _
  $region31: #{_loss_fn.1} parent=0 // pred_check_branch
    %261 = sbr.rel (0) target = $region33
  $region32: #{_loss_fn.1} parent=0 // pred_region
    _
  $region33: #{_loss_fn.1} parent=0 // pred_fallthru
    _
  // Predicated region
  $region34: #{_loss_fn.1} parent=0 // pred_check
    _
  $region35: #{_loss_fn.1} parent=0 // pred_check_branch
    %263 = sbr.rel (0) target = $region37
  $region36: #{_loss_fn.1} parent=0 // pred_region
    _
  $region37: #{_loss_fn.1} parent=0 // pred_fallthru
    _
  // Predicated region
  $region38: #{_loss_fn.1} parent=0 // pred_check
    _
  $region39: #{_loss_fn.1} parent=0 // pred_check_branch
    %265 = sbr.rel (0) target = $region41
  $region40: #{_loss_fn.1} parent=0 // pred_region
    _
  $region41: #{_loss_fn.1} parent=0 // pred_fallthru
    _
  // Predicated region
  $region42: #{_loss_fn.1} parent=0 // pred_check
    _
  $region43: #{_loss_fn.1} parent=0 // pred_check_branch
    %267 = sbr.rel (0) target = $region45
  $region44: #{_loss_fn.1} parent=0 // pred_region
    _
  $region45: #{_loss_fn.1} parent=0 // pred_fallthru
    _

</llo_original>
